<compile_context>
chip_gen: v5e
topology: v5e:2x2
jax: 0.10.0
libtpu: 0.0.40
codegen_flags: <defaults>
</compile_context>

<pallas_src>
import numpy as np
import jax
import jax.numpy as jnp
from jax.experimental import pallas as pl
from jax.experimental.pallas import tpu as pltpu

TEMPERATURE = 1.0  # Decoder.__init__ sets temperature = 1.0


def _round_up(x, m):
    return ((x + m - 1) // m) * m


def _relaxed_bernoulli_gate(u, logits):
    """RelaxedBernoulli rsample (temperature=1.0), clamp_probs-compatible."""
    eps = jnp.finfo(jnp.float32).eps
    u = jnp.clip(u, eps, 1.0 - eps)
    return jax.nn.sigmoid((jnp.log(u) - jnp.log1p(-u) + logits) * (1.0 / TEMPERATURE))


# ---------------------------------------------------------------------------
# Kernel: one batch tile, batch-in-lanes
# ---------------------------------------------------------------------------
def decoder_fused_kernel(xT_ref, w1T_ref, w2_ref, b_ref, out_ref):
    xT = xT_ref[...]                   # (Din+1, TN)  columns are samples [z|c|1]^T
    w1T = w1T_ref[...]                 # (3H, Din+1)  fused first layer (+ bias col)
    din1 = w1T.shape[1]                # static (<= 4)

    # First layer as outer-product FMAs on the VPU (contraction depth <= 4:
    # an MXU pass would be nearly empty).  Lane-broadcast operand is the
    # grid-invariant weight column; the per-tile xT row is a stride-0
    # sublane broadcast.
    h = w1T[:, 0:1] * xT[0:1, :]                     # (3H,1)*(1,TN) -> (3H,TN)
    for k in range(1, din1):                         # short static loop
        h = h + w1T[:, k:k + 1] * xT[k:k + 1, :]
    h = jnp.tanh(h)                                  # (3H, TN)

    # Second layer: single MXU pass over the gate-scaled stacked weights,
    # then one column-bias add (intercept + gated output biases pre-folded).
    y = jnp.dot(w2_ref[...], h, preferred_element_type=jnp.float32) + b_ref[...]
    out_ref[...] = y.astype(out_ref.dtype)           # lane-dense (P, TN) store


# ---------------------------------------------------------------------------
# Param-only packing (hoisted out of the per-call path)
# ---------------------------------------------------------------------------
def pack_decoder_statics(params):
    """Depends only on the module parameters, not on the gate uniforms."""
    dim_z = params["w1z"].shape[1]
    dim_c = params["w1c"].shape[1]
    H = params["w1z"].shape[0]
    P = params["w2z"].shape[0]
    Din = dim_z + dim_c
    Din1 = Din + 1
    f32 = jnp.float32

    # rows [0:H]   -> mapping_z   (cols [0:dim_z] + bias col)
    # rows [H:2H]  -> mapping_c   (cols [dim_z:Din] + bias col)
    # rows [2H:3H] -> mapping_cz  (cols [0:Din] + bias col)
    w1T = jnp.zeros((3 * H, Din1), f32)
    w1T = w1T.at[0:H, 0:dim_z].set(params["w1z"])
    w1T = w1T.at[H:2 * H, dim_z:Din].set(params["w1c"])
    w1T = w1T.at[2 * H:3 * H, 0:Din].set(params["w1cz"])
    w1T = w1T.at[0:H, Din].set(params["b1z"][0])
    w1T = w1T.at[H:2 * H, Din].set(params["b1c"][0])
    w1T = w1T.at[2 * H:3 * H, Din].set(params["b1cz"][0])

    return dict(
        dim_z=dim_z, dim_c=dim_c, H=H, P=P,
        w1T=w1T,                                        # (3H, Din+1)
        w2z=params["w2z"], w2c=params["w2c"], w2cz=params["w2cz"],   # (P, H)
        b2z_col=params["b2z"].T, b2c_col=params["b2c"].T,
        b2cz_col=params["b2cz"].T,                      # (P, 1)
        intercept_col=params["intercept"].T,            # (P, 1)
        qlogits_z=params["qlogits_z"], qlogits_c=params["qlogits_c"],
        qlogits_cz=params["qlogits_cz"],
    )


def _choose_block_n(n):
    n128 = _round_up(n, 128)
    if n128 <= 256:
        return n128
    # >= 2 tiles so the "parallel" axis can shard across v7x's 2 TensorCores;
    # cap at 2048 lanes (per-step VMEM is only a few hundred KiB).
    return min(2048, _round_up((n128 + 1) // 2, 128))


# ---------------------------------------------------------------------------
# Per-call wrapper: gate folding, batch-in-lanes packing, pallas_call
# ---------------------------------------------------------------------------
def decoder_forward(z, c, statics, uniforms):
    N = z.shape[0]
    dim_z, dim_c = statics["dim_z"], statics["dim_c"]
    H, P = statics["H"], statics["P"]
    Din1 = dim_z + dim_c + 1
    f32 = jnp.float32

    # Gates (tiny (1,P) elementwise) hoisted out of the kernel, as columns.
    w_z = _relaxed_bernoulli_gate(uniforms["u_z"], statics["qlogits_z"]).T     # (P,1)
    w_c = _relaxed_bernoulli_gate(uniforms["u_c"], statics["qlogits_c"]).T
    w_cz = _relaxed_bernoulli_gate(uniforms["u_cz"], statics["qlogits_cz"]).T

    # Fold gates into the stacked second layer:  w*(W2 h + b2) == (w*W2) h + w*b2
    w2_gated = jnp.concatenate(
        [statics["w2z"] * w_z, statics["w2c"] * w_c, statics["w2cz"] * w_cz],
        axis=1)                                                                 # (P, 3H)
    b_col = (statics["intercept_col"]
             + w_z * statics["b2z_col"]
             + w_c * statics["b2c_col"]
             + w_cz * statics["b2cz_col"])                                      # (P, 1)

    # Batch-in-lanes input [z | c | 1]^T, lane-padded to a multiple of 128.
    xT = jnp.concatenate([z.T, c.T, jnp.ones((1, N), f32)], axis=0)             # (Din1, N)
    block_n = _choose_block_n(N)
    n_pad = _round_up(_round_up(N, 128), block_n)
    if n_pad != N:
        xT = jnp.pad(xT, ((0, 0), (0, n_pad - N)))

    outT = pl.pallas_call(
        decoder_fused_kernel,
        out_shape=jax.ShapeDtypeStruct((P, n_pad), f32),
        grid_spec=pltpu.PrefetchScalarGridSpec(
            num_scalar_prefetch=0,
            grid=(n_pad // block_n,),
            in_specs=[
                pl.BlockSpec((Din1, block_n), lambda i: (0, i)),   # batch-tiled xT
                pl.BlockSpec((3 * H, Din1), lambda i: (0, 0)),     # resident weights
                pl.BlockSpec((P, 3 * H), lambda i: (0, 0)),        # resident weights
                pl.BlockSpec((P, 1), lambda i: (0, 0)),            # resident bias col
            ],
            out_specs=pl.BlockSpec((P, block_n), lambda i: (0, i)),  # lane-dense out
        ),
        compiler_params=pltpu.CompilerParams(
            dimension_semantics=("parallel",)),
    )(xT, statics["w1T"], w2_gated, b_col)

    return outT[:, :N].T                                             # (N, P)


# ---------------------------------------------------------------------------
# Synthetic parameters matching the PyTorch module's shapes (torch orientation)
# ---------------------------------------------------------------------------
def make_params(key, dim_z, dim_c, hidden, output_dim):
    ks = jax.random.split(key, 6)

    def lin(k, fan_in, fan_out):
        kw, kb = jax.random.split(k)
        bound = 1.0 / np.sqrt(fan_in)
        w = jax.random.uniform(kw, (fan_out, fan_in), jnp.float32, -bound, bound)
        b = jax.random.uniform(kb, (1, fan_out), jnp.float32, -bound, bound)
        return w, b

    w1z, b1z = lin(ks[0], dim_z, hidden)
    w2z, b2z = lin(ks[1], hidden, output_dim)
    w1c, b1c = lin(ks[2], dim_c, hidden)
    w2c, b2c = lin(ks[3], hidden, output_dim)
    w1cz, b1cz = lin(ks[4], dim_z + dim_c, hidden)
    w2cz, b2cz = lin(ks[5], hidden, output_dim)

    return dict(
        w1z=w1z, b1z=b1z, w2z=w2z, b2z=b2z,
        w1c=w1c, b1c=b1c, w2c=w2c, b2c=b2c,
        w1cz=w1cz, b1cz=b1cz, w2cz=w2cz, b2cz=b2cz,
        intercept=jnp.zeros((1, output_dim), jnp.float32),
        qlogits_z=3.0 * jnp.ones((1, output_dim), jnp.float32),
        qlogits_c=3.0 * jnp.ones((1, output_dim), jnp.float32),
        qlogits_cz=2.0 * jnp.ones((1, output_dim), jnp.float32),
    )


# ---------------------------------------------------------------------------
# Pure-JAX reference mirroring the PyTorch semantics (verification)
# ---------------------------------------------------------------------------
def reference_forward(z, c, params, uniforms):
    def mlp(x, w1, b1, w2, b2):
        return jnp.tanh(x @ w1.T + b1) @ w2.T + b2

    f_z = mlp(z, params["w1z"], params["b1z"], params["w2z"], params["b2z"])
    f_c = mlp(c, params["w1c"], params["b1c"], params["w2c"], params["b2c"])
    zc = jnp.concatenate([z, c], axis=1)
    f_cz = mlp(zc, params["w1cz"], params["b1cz"], params["w2cz"], params["b2cz"])

    w_z = _relaxed_bernoulli_gate(uniforms["u_z"], params["qlogits_z"])
    w_c = _relaxed_bernoulli_gate(uniforms["u_c"], params["qlogits_c"])
    w_cz = _relaxed_bernoulli_gate(uniforms["u_cz"], params["qlogits_cz"])

    return params["intercept"] + w_z * f_z + w_c * f_c + w_cz * f_cz


if __name__ == "__main__":
    # Neural Decomposition-style shapes: latent z dim 2, covariate c dim 1,
    # hidden 32, output (data) dim 16.  Batch sizes exercise the single-tile
    # path (8, 37) and the padded multi-tile path (300 -> 2 tiles of 256).
    dim_z, dim_c, hidden, output_dim = 2, 1, 32, 16

    key = jax.random.PRNGKey(0)
    k_param, k_z, k_uz, k_uc, k_ucz = jax.random.split(key, 5)
    params = make_params(k_param, dim_z, dim_c, hidden, output_dim)
    statics = pack_decoder_statics(params)      # hoisted param-only packing

    for N in (8, 37, 300):
        kz, kc = jax.random.split(jax.random.fold_in(k_z, N))
        z = jax.random.normal(kz, (N, dim_z), jnp.float32)
        c = jax.random.normal(kc, (N, dim_c), jnp.float32)
        uniforms = dict(
            u_z=jax.random.uniform(k_uz, (1, output_dim), jnp.float32),
            u_c=jax.random.uniform(k_uc, (1, output_dim), jnp.float32),
            u_cz=jax.random.uniform(k_ucz, (1, output_dim), jnp.float32),
        )

        out = jax.block_until_ready(decoder_forward(z, c, statics, uniforms))
        ref = reference_forward(z, c, params, uniforms)

        assert out.shape == (N, output_dim)
        np.testing.assert_allclose(np.asarray(out), np.asarray(ref),
                                   rtol=2e-5, atol=2e-5)

    print("KERNEL_OK")
</pallas_src>

<mosaic_0001>
module attributes {stable_mosaic.version = 11 : i64} {
  func.func @decoder_fused_kernel(%arg0: i32, %arg1: memref<4x128xf32, #tpu.memory_space<vmem>>, %arg2: memref<96x4xf32, #tpu.memory_space<vmem>>, %arg3: memref<16x96xf32, #tpu.memory_space<vmem>>, %arg4: memref<16x1xf32, #tpu.memory_space<vmem>>, %arg5: memref<16x128xf32, #tpu.memory_space<vmem>>) attributes {dimension_semantics = [#tpu.dimension_semantics<parallel>], iteration_bounds = array<i64: 1>, scalar_prefetch = 0 : i64, scratch_operands = 0 : i64, tpu.core_type = #tpu.core_type<tc>, window_params = [{transform_indices = @transform_0, window_bounds = array<i64: 4, 128>}, {pipeline_mode = #tpu.pipeline_mode<synchronous>, transform_indices = @transform_1, window_bounds = array<i64: 96, 4>}, {pipeline_mode = #tpu.pipeline_mode<synchronous>, transform_indices = @transform_2, window_bounds = array<i64: 16, 96>}, {pipeline_mode = #tpu.pipeline_mode<synchronous>, transform_indices = @transform_3, window_bounds = array<i64: 16, 1>}, {transform_indices = @transform_4, window_bounds = array<i64: 16, 128>}]} {
    %c0 = arith.constant 0 : index
    %c0_0 = arith.constant 0 : index
    %0 = vector.load %arg1[%c0, %c0_0] : memref<4x128xf32, #tpu.memory_space<vmem>>, vector<4x128xf32>
    %c0_1 = arith.constant 0 : index
    %c0_2 = arith.constant 0 : index
    %1 = vector.load %arg2[%c0_1, %c0_2] : memref<96x4xf32, #tpu.memory_space<vmem>>, vector<96x4xf32>
    %2 = vector.extract_strided_slice %1 {offsets = [0, 0], sizes = [96, 1], strides = [1, 1]} : vector<96x4xf32> to vector<96x1xf32>
    %3 = vector.extract_strided_slice %0 {offsets = [0, 0], sizes = [1, 128], strides = [1, 1]} : vector<4x128xf32> to vector<1x128xf32>
    %4 = vector.broadcast %2 : vector<96x1xf32> to vector<96x128xf32>
    %5 = vector.broadcast %3 : vector<1x128xf32> to vector<96x128xf32>
    %6 = arith.mulf %4, %5 : vector<96x128xf32>
    %7 = vector.extract_strided_slice %1 {offsets = [0, 1], sizes = [96, 1], strides = [1, 1]} : vector<96x4xf32> to vector<96x1xf32>
    %8 = vector.extract_strided_slice %0 {offsets = [1, 0], sizes = [1, 128], strides = [1, 1]} : vector<4x128xf32> to vector<1x128xf32>
    %9 = vector.broadcast %7 : vector<96x1xf32> to vector<96x128xf32>
    %10 = vector.broadcast %8 : vector<1x128xf32> to vector<96x128xf32>
    %11 = arith.mulf %9, %10 : vector<96x128xf32>
    %12 = arith.addf %6, %11 : vector<96x128xf32>
    %13 = vector.extract_strided_slice %1 {offsets = [0, 2], sizes = [96, 1], strides = [1, 1]} : vector<96x4xf32> to vector<96x1xf32>
    %14 = vector.extract_strided_slice %0 {offsets = [2, 0], sizes = [1, 128], strides = [1, 1]} : vector<4x128xf32> to vector<1x128xf32>
    %15 = vector.broadcast %13 : vector<96x1xf32> to vector<96x128xf32>
    %16 = vector.broadcast %14 : vector<1x128xf32> to vector<96x128xf32>
    %17 = arith.mulf %15, %16 : vector<96x128xf32>
    %18 = arith.addf %12, %17 : vector<96x128xf32>
    %19 = vector.extract_strided_slice %1 {offsets = [0, 3], sizes = [96, 1], strides = [1, 1]} : vector<96x4xf32> to vector<96x1xf32>
    %20 = vector.extract_strided_slice %0 {offsets = [3, 0], sizes = [1, 128], strides = [1, 1]} : vector<4x128xf32> to vector<1x128xf32>
    %21 = vector.broadcast %19 : vector<96x1xf32> to vector<96x128xf32>
    %22 = vector.broadcast %20 : vector<1x128xf32> to vector<96x128xf32>
    %23 = arith.mulf %21, %22 : vector<96x128xf32>
    %24 = arith.addf %18, %23 : vector<96x128xf32>
    %25 = math.tanh %24 : vector<96x128xf32>
    %c0_3 = arith.constant 0 : index
    %c0_4 = arith.constant 0 : index
    %26 = vector.load %arg3[%c0_3, %c0_4] : memref<16x96xf32, #tpu.memory_space<vmem>>, vector<16x96xf32>
    %cst = arith.constant dense<0.000000e+00> : vector<16x128xf32>
    %27 = tpu.matmul %26, %25, %cst {dimension_numbers = #tpu.dot_dimension_numbers<[1], [0], [0], [1], [0, 0, 1, 1], [], []>} : vector<16x96xf32>, vector<96x128xf32>, vector<16x128xf32> -> vector<16x128xf32>
    %c0_5 = arith.constant 0 : index
    %c0_6 = arith.constant 0 : index
    %28 = vector.load %arg4[%c0_5, %c0_6] : memref<16x1xf32, #tpu.memory_space<vmem>>, vector<16x1xf32>
    %29 = vector.broadcast %28 : vector<16x1xf32> to vector<16x128xf32>
    %30 = arith.addf %27, %29 : vector<16x128xf32>
    %c0_7 = arith.constant 0 : index
    %c0_8 = arith.constant 0 : index
    %31 = vector.load %arg5[%c0_7, %c0_8] : memref<16x128xf32, #tpu.memory_space<vmem>>, vector<16x128xf32>
    tpu.vector_store %arg5[%c0_7, %c0_8], %30 {strides = array<i32>} : memref<16x128xf32, #tpu.memory_space<vmem>>, vector<16x128xf32>,
    return
  }
  func.func @transform_0(%arg0: i32) -> (i32, i32) {
    %c0_i32 = arith.constant 0 : i32
    %c0_i32_0 = arith.constant 0 : i32
    return %c0_i32, %arg0 : i32, i32
  }
  func.func @transform_1(%arg0: i32) -> (i32, i32) {
    %c0_i32 = arith.constant 0 : i32
    %c0_i32_0 = arith.constant 0 : i32
    %c0_i32_1 = arith.constant 0 : i32
    return %c0_i32, %c0_i32_0 : i32, i32
  }
  func.func @transform_2(%arg0: i32) -> (i32, i32) {
    %c0_i32 = arith.constant 0 : i32
    %c0_i32_0 = arith.constant 0 : i32
    %c0_i32_1 = arith.constant 0 : i32
    return %c0_i32, %c0_i32_0 : i32, i32
  }
  func.func @transform_3(%arg0: i32) -> (i32, i32) {
    %c0_i32 = arith.constant 0 : i32
    %c0_i32_0 = arith.constant 0 : i32
    %c0_i32_1 = arith.constant 0 : i32
    return %c0_i32, %c0_i32_0 : i32, i32
  }
  func.func @transform_4(%arg0: i32) -> (i32, i32) {
    %c0_i32 = arith.constant 0 : i32
    %c0_i32_0 = arith.constant 0 : i32
    return %c0_i32, %arg0 : i32, i32
  }
}

</mosaic_0001>

<llo_original>
// kernel: tpu_custom_call.1
$region0: #{tpu_custom_call.1}
  #allocation0 [shape = 'u32[]', space=smem, size = 0x4, offset = 0x4, fixed_abs, tag = 'smem constant byte address 0x4 - core index']
  #allocation1 [shape = 'u32[72,128]{1,0:T(1,128)}', space=vmem, size = 0x9000, scoped, tag = 'internal scratch']
  %s0 = inlined_call_operand.vmem [shape: f32[4,128], index: 0, kind: input, shape index: {}]
  %s1 = inlined_call_operand.vmem [shape: f32[96,4], index: 1, kind: input, shape index: {}]
  %s2 = inlined_call_operand.vmem [shape: f32[16,96], index: 2, kind: input, shape index: {}]
  %s3 = inlined_call_operand.vmem [shape: f32[16,1], index: 3, kind: input, shape index: {}]
  %s4 = inlined_call_operand.hbm [shape: f32[16,128], index: 4, kind: output, shape index: {}]
  %s5 = sld [smem:[#allocation0]]
  $region26: #{tpu_custom_call.1} parent=0
    _
  %s7 = ssub.s32 1, %s5
  %s8 = scalar_select 0, %s7, %s5
  $region1: #{tpu_custom_call.1} parent=0
    #allocation2 [shape = 'u8[8192]{0}', space=vmem, size = 0x2000, scoped, tag = 'output window, operand 0, single buffered']
    #allocation3 [shape = 's32[1]{0}', space=sflag, size = 0x4, scoped, tag = 'scoped memory for tpu_custom_call.1']
    %9 = vsyncpa [#allocation3], 0
    // Predicated region
    $region2: #{tpu_custom_call.1} parent=1 // pred_check
      _
    $region3: #{tpu_custom_call.1} parent=1 // pred_check_branch
      %11 = sbr.rel (0) target = $region5
    $region4: #{tpu_custom_call.1} parent=1 // pred_region
      _
    $region5: #{tpu_custom_call.1} parent=1 // pred_fallthru
      _
    // Predicated region
    $region6: #{tpu_custom_call.1} parent=1 // pred_check
      _
    $region7: #{tpu_custom_call.1} parent=1 // pred_check_branch
      %13 = sbr.rel (0) target = $region9
    $region8: #{tpu_custom_call.1} parent=1 // pred_region
      _
    $region9: #{tpu_custom_call.1} parent=1 // pred_fallthru
      _
    // Predicated region
    $region10: #{tpu_custom_call.1} parent=1 // pred_check
      _
    $region11: #{tpu_custom_call.1} parent=1 // pred_check_branch
      %15 = sbr.rel (0) target = $region13
    $region12: #{tpu_custom_call.1} parent=1 // pred_region
      _
    $region13: #{tpu_custom_call.1} parent=1 // pred_fallthru
      _
    // Predicated region
    $region14: #{tpu_custom_call.1} parent=1 // pred_check
      _
    $region15: #{tpu_custom_call.1} parent=1 // pred_check_branch
      %17 = sbr.rel (0) target = $region17
    $region16: #{tpu_custom_call.1} parent=1 // pred_region
      _
    $region17: #{tpu_custom_call.1} parent=1 // pred_fallthru
      _
    %v18 = vld [vmem:[%s0] sm:$0xf]
    %v19 = vld [vmem:[%s1] sm:$0xff]
    %v20 = vld [vmem:[%s1 + $0x8] sm:$0xff]
    %v21 = vld [vmem:[%s1 + $0x10] sm:$0xff]
    %v22 = vld [vmem:[%s1 + $0x18] sm:$0xff]
    %v23 = vld [vmem:[%s1 + $0x20] sm:$0xff]
    %v24 = vld [vmem:[%s1 + $0x28] sm:$0xff]
    %v25 = vld [vmem:[%s1 + $0x30] sm:$0xff]
    %v26 = vld [vmem:[%s1 + $0x38] sm:$0xff]
    %v27 = vld [vmem:[%s1 + $0x40] sm:$0xff]
    %v28 = vld [vmem:[%s1 + $0x48] sm:$0xff]
    %v29 = vld [vmem:[%s1 + $0x50] sm:$0xff]
    %v30 = vld [vmem:[%s1 + $0x58] sm:$0xff]
    %32 = vset.pattern.permute.xlu0 0
    %33 = vperm.xlu0 %32, %v19
    %v34 = vpop.permute.xlu0 %33
    %37 = vset.pattern.permute.xlu0 0
    %38 = vperm.xlu0 %37, %v20
    %v39 = vpop.permute.xlu0 %38
    %42 = vset.pattern.permute.xlu0 0
    %43 = vperm.xlu0 %42, %v21
    %v44 = vpop.permute.xlu0 %43
    %47 = vset.pattern.permute.xlu0 0
    %48 = vperm.xlu0 %47, %v22
    %v49 = vpop.permute.xlu0 %48
    %52 = vset.pattern.permute.xlu0 0
    %53 = vperm.xlu0 %52, %v23
    %v54 = vpop.permute.xlu0 %53
    %57 = vset.pattern.permute.xlu0 0
    %58 = vperm.xlu0 %57, %v24
    %v59 = vpop.permute.xlu0 %58
    %62 = vset.pattern.permute.xlu0 0
    %63 = vperm.xlu0 %62, %v25
    %v64 = vpop.permute.xlu0 %63
    %67 = vset.pattern.permute.xlu0 0
    %68 = vperm.xlu0 %67, %v26
    %v69 = vpop.permute.xlu0 %68
    %72 = vset.pattern.permute.xlu0 0
    %73 = vperm.xlu0 %72, %v27
    %v74 = vpop.permute.xlu0 %73
    %77 = vset.pattern.permute.xlu0 0
    %78 = vperm.xlu0 %77, %v28
    %v79 = vpop.permute.xlu0 %78
    %82 = vset.pattern.permute.xlu0 0
    %83 = vperm.xlu0 %82, %v29
    %v84 = vpop.permute.xlu0 %83
    %87 = vset.pattern.permute.xlu0 0
    %88 = vperm.xlu0 %87, %v30
    %v89 = vpop.permute.xlu0 %88
    %v91 = vperm.slane %v18, 0
    %v92 = vmul.f32 %v34, %v91
    %v93 = vmul.f32 %v39, %v91
    %v94 = vmul.f32 %v44, %v91
    %v95 = vmul.f32 %v49, %v91
    %v96 = vmul.f32 %v54, %v91
    %v97 = vmul.f32 %v59, %v91
    %v98 = vmul.f32 %v64, %v91
    %v99 = vmul.f32 %v69, %v91
    %v100 = vmul.f32 %v74, %v91
    %v101 = vmul.f32 %v79, %v91
    %v102 = vmul.f32 %v84, %v91
    %v103 = vmul.f32 %v89, %v91
    %104 = vset.pattern.permute.xlu0 1
    %105 = vperm.xlu0 %104, %v19
    %v106 = vpop.permute.xlu0 %105
    %108 = vset.pattern.permute.xlu0 1
    %109 = vperm.xlu0 %108, %v20
    %v110 = vpop.permute.xlu0 %109
    %112 = vset.pattern.permute.xlu0 1
    %113 = vperm.xlu0 %112, %v21
    %v114 = vpop.permute.xlu0 %113
    %116 = vset.pattern.permute.xlu0 1
    %117 = vperm.xlu0 %116, %v22
    %v118 = vpop.permute.xlu0 %117
    %120 = vset.pattern.permute.xlu0 1
    %121 = vperm.xlu0 %120, %v23
    %v122 = vpop.permute.xlu0 %121
    %124 = vset.pattern.permute.xlu0 1
    %125 = vperm.xlu0 %124, %v24
    %v126 = vpop.permute.xlu0 %125
    %128 = vset.pattern.permute.xlu0 1
    %129 = vperm.xlu0 %128, %v25
    %v130 = vpop.permute.xlu0 %129
    %132 = vset.pattern.permute.xlu0 1
    %133 = vperm.xlu0 %132, %v26
    %v134 = vpop.permute.xlu0 %133
    %136 = vset.pattern.permute.xlu0 1
    %137 = vperm.xlu0 %136, %v27
    %v138 = vpop.permute.xlu0 %137
    %140 = vset.pattern.permute.xlu0 1
    %141 = vperm.xlu0 %140, %v28
    %v142 = vpop.permute.xlu0 %141
    %144 = vset.pattern.permute.xlu0 1
    %145 = vperm.xlu0 %144, %v29
    %v146 = vpop.permute.xlu0 %145
    %148 = vset.pattern.permute.xlu0 1
    %149 = vperm.xlu0 %148, %v30
    %v150 = vpop.permute.xlu0 %149
    %v152 = vperm.slane %v18, 1
    %v153 = vmul.f32 %v106, %v152
    %v154 = vmul.f32 %v110, %v152
    %v155 = vmul.f32 %v114, %v152
    %v156 = vmul.f32 %v118, %v152
    %v157 = vmul.f32 %v122, %v152
    %v158 = vmul.f32 %v126, %v152
    %v159 = vmul.f32 %v130, %v152
    %v160 = vmul.f32 %v134, %v152
    %v161 = vmul.f32 %v138, %v152
    %v162 = vmul.f32 %v142, %v152
    %v163 = vmul.f32 %v146, %v152
    %v164 = vmul.f32 %v150, %v152
    %v165 = vadd.f32 %v92, %v153
    %v166 = vadd.f32 %v93, %v154
    %v167 = vadd.f32 %v94, %v155
    %v168 = vadd.f32 %v95, %v156
    %v169 = vadd.f32 %v96, %v157
    %v170 = vadd.f32 %v97, %v158
    %v171 = vadd.f32 %v98, %v159
    %v172 = vadd.f32 %v99, %v160
    %v173 = vadd.f32 %v100, %v161
    %v174 = vadd.f32 %v101, %v162
    %v175 = vadd.f32 %v102, %v163
    %v176 = vadd.f32 %v103, %v164
    %177 = vset.pattern.permute.xlu0 2
    %178 = vperm.xlu0 %177, %v19
    %v179 = vpop.permute.xlu0 %178
    %181 = vset.pattern.permute.xlu0 2
    %182 = vperm.xlu0 %181, %v20
    %v183 = vpop.permute.xlu0 %182
    %185 = vset.pattern.permute.xlu0 2
    %186 = vperm.xlu0 %185, %v21
    %v187 = vpop.permute.xlu0 %186
    %189 = vset.pattern.permute.xlu0 2
    %190 = vperm.xlu0 %189, %v22
    %v191 = vpop.permute.xlu0 %190
    %193 = vset.pattern.permute.xlu0 2
    %194 = vperm.xlu0 %193, %v23
    %v195 = vpop.permute.xlu0 %194
    %197 = vset.pattern.permute.xlu0 2
    %198 = vperm.xlu0 %197, %v24
    %v199 = vpop.permute.xlu0 %198
    %201 = vset.pattern.permute.xlu0 2
    %202 = vperm.xlu0 %201, %v25
    %v203 = vpop.permute.xlu0 %202
    %205 = vset.pattern.permute.xlu0 2
    %206 = vperm.xlu0 %205, %v26
    %v207 = vpop.permute.xlu0 %206
    %209 = vset.pattern.permute.xlu0 2
    %210 = vperm.xlu0 %209, %v27
    %v211 = vpop.permute.xlu0 %210
    %213 = vset.pattern.permute.xlu0 2
    %214 = vperm.xlu0 %213, %v28
    %v215 = vpop.permute.xlu0 %214
    %217 = vset.pattern.permute.xlu0 2
    %218 = vperm.xlu0 %217, %v29
    %v219 = vpop.permute.xlu0 %218
    %221 = vset.pattern.permute.xlu0 2
    %222 = vperm.xlu0 %221, %v30
    %v223 = vpop.permute.xlu0 %222
    %v225 = vperm.slane %v18, 2
    %v226 = vmul.f32 %v179, %v225
    %v227 = vmul.f32 %v183, %v225
    %v228 = vmul.f32 %v187, %v225
    %v229 = vmul.f32 %v191, %v225
    %v230 = vmul.f32 %v195, %v225
    %v231 = vmul.f32 %v199, %v225
    %v232 = vmul.f32 %v203, %v225
    %v233 = vmul.f32 %v207, %v225
    %v234 = vmul.f32 %v211, %v225
    %v235 = vmul.f32 %v215, %v225
    %v236 = vmul.f32 %v219, %v225
    %v237 = vmul.f32 %v223, %v225
    %v238 = vadd.f32 %v165, %v226
    %v239 = vadd.f32 %v166, %v227
    %v240 = vadd.f32 %v167, %v228
    %v241 = vadd.f32 %v168, %v229
    %v242 = vadd.f32 %v169, %v230
    %v243 = vadd.f32 %v170, %v231
    %v244 = vadd.f32 %v171, %v232
    %v245 = vadd.f32 %v172, %v233
    %v246 = vadd.f32 %v173, %v234
    %v247 = vadd.f32 %v174, %v235
    %v248 = vadd.f32 %v175, %v236
    %v249 = vadd.f32 %v176, %v237
    %250 = vset.pattern.permute.xlu0 3
    %251 = vperm.xlu0 %250, %v19
    %v252 = vpop.permute.xlu0 %251
    %254 = vset.pattern.permute.xlu0 3
    %255 = vperm.xlu0 %254, %v20
    %v256 = vpop.permute.xlu0 %255
    %258 = vset.pattern.permute.xlu0 3
    %259 = vperm.xlu0 %258, %v21
    %v260 = vpop.permute.xlu0 %259
    %262 = vset.pattern.permute.xlu0 3
    %263 = vperm.xlu0 %262, %v22
    %v264 = vpop.permute.xlu0 %263
    %266 = vset.pattern.permute.xlu0 3
    %267 = vperm.xlu0 %266, %v23
    %v268 = vpop.permute.xlu0 %267
    %270 = vset.pattern.permute.xlu0 3
    %271 = vperm.xlu0 %270, %v24
    %v272 = vpop.permute.xlu0 %271
    %274 = vset.pattern.permute.xlu0 3
    %275 = vperm.xlu0 %274, %v25
    %v276 = vpop.permute.xlu0 %275
    %278 = vset.pattern.permute.xlu0 3
    %279 = vperm.xlu0 %278, %v26
    %v280 = vpop.permute.xlu0 %279
    %282 = vset.pattern.permute.xlu0 3
    %283 = vperm.xlu0 %282, %v27
    %v284 = vpop.permute.xlu0 %283
    %286 = vset.pattern.permute.xlu0 3
    %287 = vperm.xlu0 %286, %v28
    %v288 = vpop.permute.xlu0 %287
    %290 = vset.pattern.permute.xlu0 3
    %291 = vperm.xlu0 %290, %v29
    %v292 = vpop.permute.xlu0 %291
    %294 = vset.pattern.permute.xlu0 3
    %295 = vperm.xlu0 %294, %v30
    %v296 = vpop.permute.xlu0 %295
    %v298 = vperm.slane %v18, 3
    %v299 = vmul.f32 %v252, %v298
    %v300 = vmul.f32 %v256, %v298
    %v301 = vmul.f32 %v260, %v298
    %v302 = vmul.f32 %v264, %v298
    %v303 = vmul.f32 %v268, %v298
    %v304 = vmul.f32 %v272, %v298
    %v305 = vmul.f32 %v276, %v298
    %v306 = vmul.f32 %v280, %v298
    %v307 = vmul.f32 %v284, %v298
    %v308 = vmul.f32 %v288, %v298
    %v309 = vmul.f32 %v292, %v298
    %v310 = vmul.f32 %v296, %v298
    %v311 = vadd.f32 %v238, %v299
    %v312 = vadd.f32 %v239, %v300
    %v313 = vadd.f32 %v240, %v301
    %v314 = vadd.f32 %v241, %v302
    %v315 = vadd.f32 %v242, %v303
    %v316 = vadd.f32 %v243, %v304
    %v317 = vadd.f32 %v244, %v305
    %v318 = vadd.f32 %v245, %v306
    %v319 = vadd.f32 %v246, %v307
    %v320 = vadd.f32 %v247, %v308
    %v321 = vadd.f32 %v248, %v309
    %v322 = vadd.f32 %v249, %v310
    %v323 = vtanh.pop %v311
    %v324 = vtanh.pop %v312
    %v325 = vtanh.pop %v313
    %v326 = vtanh.pop %v314
    %v327 = vtanh.pop %v315
    %v328 = vtanh.pop %v316
    %v329 = vtanh.pop %v317
    %v330 = vtanh.pop %v318
    %v331 = vtanh.pop %v319
    %v332 = vtanh.pop %v320
    %v333 = vtanh.pop %v321
    %v334 = vtanh.pop %v322
    %v335 = vld [vmem:[%s2] sm:$0xff]
    %v336 = vld [vmem:[%s2 + $0x8] sm:$0xff]
    %v337 = vld [vmem:[%s3] sm:$0xff]
    %v338 = vld [vmem:[%s3 + $0x8] sm:$0xff]
    %340 = vset.pattern.permute.xlu0 0
    %341 = vperm.xlu0 %340, %v337
    %v342 = vpop.permute.xlu0 %341
    %345 = vset.pattern.permute.xlu0 0
    %346 = vperm.xlu0 %345, %v338
    %v347 = vpop.permute.xlu0 %346
    %vm349 = vcmask 785408
    %v351 = vsel %vm349, %v335, 0
    %v354 = vsel %vm349, %v336, 0
    %356 = vmatpush.msra.mxu0 0.0
    %357 = vmatpush.msra.mxu0 0.0
    %358 = vmatpush.msra.mxu0 0.0
    %359 = vmatpush.msra.mxu0 0.0
    %360 = vmatpush.msra.mxu0 %v334
    %361 = vmatpush.msra.mxu0 %v333
    %362 = vmatpush.msra.mxu0 %v332
    %363 = vmatpush.msra.mxu0 %v331
    %364 = vmatpush.msra.mxu0 %v330
    %365 = vmatpush.msra.mxu0 %v329
    %366 = vmatpush.msra.mxu0 %v328
    %367 = vmatpush.msra.mxu0 %v327
    %368 = vmatpush.msra.mxu0 %v326
    %369 = vmatpush.msra.mxu0 %v325
    %370 = vmatpush.msra.mxu0 %v324
    %371 = vmatpush.msra.mxu0 %v323
    %372 = vmatmul.f32.gmra.mxu0 %v351
    %v373 = vpop.f32.mrf.mxu0
    %v374 = vadd.f32 %v342, %v373
    %375 = vmatmul.f32.gmra.mxu0 %v354
    %v376 = vpop.f32.mrf.mxu0
    %v377 = vadd.f32 %v347, %v376
    %378 = vdwg.mxu0
    %379 = vst [vmem:[#allocation2] sm:$0xff] %v374
    %380 = vst [vmem:[#allocation2 + $0x8] sm:$0xff] %v377
    // Predicated region
    $region18: #{tpu_custom_call.1} parent=1 // pred_check
      _
    $region19: #{tpu_custom_call.1} parent=1 // pred_check_branch
      %382 = sbr.rel (0) target = $region21
    $region20: #{tpu_custom_call.1} parent=1 // pred_region
      %384 = vsyncadd [#allocation3], 0
      %s385 = sshll.u32 [#allocation2], 4
      %s386 = int_to_ptr.vmem [resolvable:$true] %s385
      %s387 = sshll.u32 %s4, 4
      %s388 = int_to_ptr.hbm [resolvable:$true] %s387
      %393 = dma.vmem_to_hbm [thread:$0]  %s386, 256, %s388, [#allocation3], 128, 128, 8
    $region21: #{tpu_custom_call.1} parent=1 // pred_fallthru
      _
    // Predicated region
    $region22: #{tpu_custom_call.1} parent=1 // pred_check
      _
    $region23: #{tpu_custom_call.1} parent=1 // pred_check_branch
      %395 = sbr.rel (0) target = $region25
    $region24: #{tpu_custom_call.1} parent=1 // pred_region
      %397 = dma.done [#allocation3], 256
    $region25: #{tpu_custom_call.1} parent=1 // pred_fallthru
      _
    %398 = vsyncpa [#allocation3], 1

</llo_original>
